<compile_context>
chip_gen: v5e
topology: v5e:2x2
jax: 0.10.0
libtpu: 0.0.40
codegen_flags: <defaults>
</compile_context>

<pallas_src>
import functools

import jax
import jax.numpy as jnp
from jax.experimental import pallas as pl
from jax.experimental.pallas import tpu as pltpu

EPS = 1e-5
_LANES = 128


def _ln_rows_kernel(x_ref, w_ref, b_ref, o_ref):
    """One block = (tile_rows, D); normalize each row over the last dim."""
    x = x_ref[...].astype(jnp.float32)
    mean = jnp.mean(x, axis=-1, keepdims=True)
    xc = x - mean
    var = jnp.mean(xc * xc, axis=-1, keepdims=True)  # biased var == F.layer_norm
    y = xc * jax.lax.rsqrt(var + EPS)
    y = y * w_ref[...].astype(jnp.float32) + b_ref[...].astype(jnp.float32)
    o_ref[...] = y.astype(o_ref.dtype)


def _ln_folded_kernel(x_ref, w_ref, b_ref, o_ref, *, d, k):
    """Small-D path. One block = (tile_rows, k*d): k = 128//d original rows are
    folded into the 128-lane axis (lane-dense DMA). Each of the k lane
    segments is an independent row -> normalize per segment (exact f32)."""
    w = w_ref[...].astype(jnp.float32)
    b = b_ref[...].astype(jnp.float32)
    for j in range(k):  # static unroll, k <= 16
        x = x_ref[:, j * d:(j + 1) * d].astype(jnp.float32)
        mean = jnp.mean(x, axis=-1, keepdims=True)
        xc = x - mean
        var = jnp.mean(xc * xc, axis=-1, keepdims=True)
        y = xc * jax.lax.rsqrt(var + EPS) * w + b
        o_ref[:, j * d:(j + 1) * d] = y.astype(o_ref.dtype)


def _choose_tile_rows(n_rows, row_width, itemsize):
    """Largest reasonable row tile: ~8 MiB blocks, <= 1024 rows, sublane-aligned."""
    mult = max(8, 32 // max(1, itemsize))        # 8 (f32) / 16 (bf16) / 32 (i8)
    target_block_bytes = 8 << 20
    rows = target_block_bytes // max(1, row_width * itemsize)
    rows = max(mult, (rows // mult) * mult)
    rows = min(rows, 1024)
    if rows >= n_rows:
        if n_rows >= 2 * mult:
            # keep >= 2 grid steps so v7x's second TensorCore is not idle
            half = (n_rows + 1) // 2
            rows = ((half + mult - 1) // mult) * mult
        else:
            rows = n_rows                        # full-dim block (always legal)
    return rows


def _compiler_params(block_bytes):
    # 2 input + 2 output pipeline buffers of the block + margin; cap at 48 MiB
    # so the budget also fits v7x (64 MiB physical VMEM).
    vmem = int(min(48 << 20, max(32 << 20, 4 * block_bytes + (8 << 20))))
    return pltpu.CompilerParams(
        dimension_semantics=("parallel",),
        vmem_limit_bytes=vmem,
    )


def _run(kernel, x2, w2, b2, tile_rows):
    n, width = x2.shape
    block_bytes = tile_rows * width * jnp.dtype(x2.dtype).itemsize
    return pl.pallas_call(
        kernel,
        out_shape=jax.ShapeDtypeStruct((n, width), x2.dtype),
        grid_spec=pltpu.PrefetchScalarGridSpec(
            num_scalar_prefetch=0,
            grid=(pl.cdiv(n, tile_rows),),          # ragged tail handled by masking
            in_specs=[
                pl.BlockSpec((tile_rows, width), lambda i: (i, 0)),
                pl.BlockSpec((1, w2.shape[1]), lambda i: (0, 0)),
                pl.BlockSpec((1, b2.shape[1]), lambda i: (0, 0)),
            ],
            out_specs=pl.BlockSpec((tile_rows, width), lambda i: (i, 0)),
        ),
        compiler_params=_compiler_params(block_bytes),
    )(x2, w2, b2)


def layer_norm(x, weight, bias=None, *, tile_rows=None):
    """Pallas LayerNorm over the last dim of x (matches F.layer_norm, eps=1e-5)."""
    d = weight.shape[0]
    assert x.shape[-1] == d, "last dim of x must match weight"
    orig_shape = x.shape
    x2 = x.reshape(-1, d)
    n = x2.shape[0]
    if bias is None:
        bias = jnp.zeros((d,), weight.dtype)
    itemsize = jnp.dtype(x2.dtype).itemsize

    # TODO(synk): for extreme D where even an 8-row block exceeds VMEM, add a
    # second "arbitrary" grid axis over D with sum/sum-sq scratch accumulators.

    k = _LANES // d if (d < _LANES and _LANES % d == 0 and d >= 8) else 1
    if k > 1 and n % k == 0:
        # Lane-dense small-D path: fold k rows into the 128-lane axis.
        width = k * d
        nf = n // k
        xf = x2.reshape(nf, width)               # contiguous -> free reshape
        rows = tile_rows if tile_rows is not None else _choose_tile_rows(nf, width, itemsize)
        kern = functools.partial(_ln_folded_kernel, d=d, k=k)
        out = _run(kern, xf, weight.reshape(1, d), bias.reshape(1, d), rows)
        return out.reshape(orig_shape)

    rows = tile_rows if tile_rows is not None else _choose_tile_rows(n, d, itemsize)
    out = _run(_ln_rows_kernel, x2, weight.reshape(1, d), bias.reshape(1, d), rows)
    return out.reshape(orig_shape)


def layer_norm_ref(x, weight, bias=None):
    xf = x.astype(jnp.float32)
    mean = jnp.mean(xf, axis=-1, keepdims=True)
    var = jnp.mean((xf - mean) ** 2, axis=-1, keepdims=True)
    y = (xf - mean) * jax.lax.rsqrt(var + EPS) * weight
    if bias is not None:
        y = y + bias
    return y.astype(x.dtype)


if __name__ == "__main__":
    key = jax.random.PRNGKey(0)
    k1, k2, k3, k4 = jax.random.split(key, 4)

    # Case 1: module defaults (weight=ones, bias=zeros), hidden=32 -> folded path.
    B, T, D = 2, 8, 32
    x = jax.random.normal(k1, (B, T, D), dtype=jnp.float32)
    w = jnp.ones((D,), jnp.float32)
    b = jnp.zeros((D,), jnp.float32)
    out = layer_norm(x, w, b)
    jax.block_until_ready(out)
    assert out.shape == x.shape and out.dtype == x.dtype
    assert jnp.allclose(out, layer_norm_ref(x, w, b), atol=1e-5, rtol=1e-5), "case1 mismatch"

    # Case 2: non-trivial affine params on the folded path.
    w2 = jax.random.normal(k2, (D,), jnp.float32)
    b2 = jax.random.normal(k3, (D,), jnp.float32)
    out2 = layer_norm(x, w2, b2)
    jax.block_until_ready(out2)
    assert jnp.allclose(out2, layer_norm_ref(x, w2, b2), atol=1e-5, rtol=1e-5), "case2 mismatch"

    # Case 3: lane-aligned D=128, ragged row count (masked tail block), bias=None.
    B3, T3, D3 = 2, 9, 128
    x3 = jax.random.normal(k4, (B3, T3, D3), dtype=jnp.float32)
    w3 = jnp.ones((D3,), jnp.float32)
    out3 = layer_norm(x3, w3, None)
    jax.block_until_ready(out3)
    assert jnp.allclose(out3, layer_norm_ref(x3, w3, None), atol=1e-5, rtol=1e-5), "case3 mismatch"

    print("KERNEL_OK")
</pallas_src>

<mosaic_0001>
module attributes {stable_mosaic.version = 11 : i64} {
  func.func @_ln_folded_kernel(%arg0: i32, %arg1: memref<4x128xf32, #tpu.memory_space<vmem>>, %arg2: memref<1x32xf32, #tpu.memory_space<vmem>>, %arg3: memref<1x32xf32, #tpu.memory_space<vmem>>, %arg4: memref<4x128xf32, #tpu.memory_space<vmem>>) attributes {dimension_semantics = [#tpu.dimension_semantics<parallel>], iteration_bounds = array<i64: 1>, scalar_prefetch = 0 : i64, scratch_operands = 0 : i64, tpu.core_type = #tpu.core_type<tc>, window_params = [{transform_indices = @transform_0, window_bounds = array<i64: 4, 128>}, {pipeline_mode = #tpu.pipeline_mode<synchronous>, transform_indices = @transform_1, window_bounds = array<i64: 1, 32>}, {pipeline_mode = #tpu.pipeline_mode<synchronous>, transform_indices = @transform_2, window_bounds = array<i64: 1, 32>}, {transform_indices = @transform_3, window_bounds = array<i64: 4, 128>}]} {
    %c0 = arith.constant 0 : index
    %c0_0 = arith.constant 0 : index
    %0 = vector.load %arg2[%c0, %c0_0] : memref<1x32xf32, #tpu.memory_space<vmem>>, vector<1x32xf32>
    %c0_1 = arith.constant 0 : index
    %c0_2 = arith.constant 0 : index
    %1 = vector.load %arg3[%c0_1, %c0_2] : memref<1x32xf32, #tpu.memory_space<vmem>>, vector<1x32xf32>
    %c0_3 = arith.constant 0 : index
    %c0_4 = arith.constant 0 : index
    %2 = vector.load %arg1[%c0_3, %c0_4] : memref<4x128xf32, #tpu.memory_space<vmem>>, vector<4x32xf32>
    %cst = arith.constant dense<0.000000e+00> : vector<4xf32>
    %3 = vector.multi_reduction <add>, %2, %cst [1] : vector<4x32xf32> to vector<4xf32>
    %4 = vector.shape_cast %3 : vector<4xf32> to vector<4x1xf32>
    %cst_5 = arith.constant 3.200000e+01 : f32
    %5 = vector.broadcast %cst_5 : f32 to vector<4x1xf32>
    %6 = arith.divf %4, %5 : vector<4x1xf32>
    %7 = vector.broadcast %6 : vector<4x1xf32> to vector<4x32xf32>
    %8 = arith.subf %2, %7 : vector<4x32xf32>
    %9 = arith.mulf %8, %8 : vector<4x32xf32>
    %cst_6 = arith.constant dense<0.000000e+00> : vector<4xf32>
    %10 = vector.multi_reduction <add>, %9, %cst_6 [1] : vector<4x32xf32> to vector<4xf32>
    %11 = vector.shape_cast %10 : vector<4xf32> to vector<4x1xf32>
    %cst_7 = arith.constant 3.200000e+01 : f32
    %12 = vector.broadcast %cst_7 : f32 to vector<4x1xf32>
    %13 = arith.divf %11, %12 : vector<4x1xf32>
    %cst_8 = arith.constant 9.99999974E-6 : f32
    %14 = vector.broadcast %cst_8 : f32 to vector<4x1xf32>
    %15 = arith.addf %13, %14 : vector<4x1xf32>
    %16 = math.rsqrt %15 : vector<4x1xf32>
    %17 = vector.broadcast %16 : vector<4x1xf32> to vector<4x32xf32>
    %18 = arith.mulf %8, %17 : vector<4x32xf32>
    %19 = vector.broadcast %0 : vector<1x32xf32> to vector<4x32xf32>
    %20 = arith.mulf %18, %19 : vector<4x32xf32>
    %21 = vector.broadcast %1 : vector<1x32xf32> to vector<4x32xf32>
    %22 = arith.addf %20, %21 : vector<4x32xf32>
    %c0_9 = arith.constant 0 : index
    %c0_10 = arith.constant 0 : index
    %23 = vector.load %arg4[%c0_9, %c0_10] : memref<4x128xf32, #tpu.memory_space<vmem>>, vector<4x32xf32>
    tpu.vector_store %arg4[%c0_9, %c0_10], %22 {strides = array<i32>} : memref<4x128xf32, #tpu.memory_space<vmem>>, vector<4x32xf32>,
    %c0_11 = arith.constant 0 : index
    %c32 = arith.constant 32 : index
    %24 = vector.load %arg1[%c0_11, %c32] : memref<4x128xf32, #tpu.memory_space<vmem>>, vector<4x32xf32>
    %cst_12 = arith.constant dense<0.000000e+00> : vector<4xf32>
    %25 = vector.multi_reduction <add>, %24, %cst_12 [1] : vector<4x32xf32> to vector<4xf32>
    %26 = vector.shape_cast %25 : vector<4xf32> to vector<4x1xf32>
    %cst_13 = arith.constant 3.200000e+01 : f32
    %27 = vector.broadcast %cst_13 : f32 to vector<4x1xf32>
    %28 = arith.divf %26, %27 : vector<4x1xf32>
    %29 = vector.broadcast %28 : vector<4x1xf32> to vector<4x32xf32>
    %30 = arith.subf %24, %29 : vector<4x32xf32>
    %31 = arith.mulf %30, %30 : vector<4x32xf32>
    %cst_14 = arith.constant dense<0.000000e+00> : vector<4xf32>
    %32 = vector.multi_reduction <add>, %31, %cst_14 [1] : vector<4x32xf32> to vector<4xf32>
    %33 = vector.shape_cast %32 : vector<4xf32> to vector<4x1xf32>
    %cst_15 = arith.constant 3.200000e+01 : f32
    %34 = vector.broadcast %cst_15 : f32 to vector<4x1xf32>
    %35 = arith.divf %33, %34 : vector<4x1xf32>
    %cst_16 = arith.constant 9.99999974E-6 : f32
    %36 = vector.broadcast %cst_16 : f32 to vector<4x1xf32>
    %37 = arith.addf %35, %36 : vector<4x1xf32>
    %38 = math.rsqrt %37 : vector<4x1xf32>
    %39 = vector.broadcast %38 : vector<4x1xf32> to vector<4x32xf32>
    %40 = arith.mulf %30, %39 : vector<4x32xf32>
    %41 = vector.broadcast %0 : vector<1x32xf32> to vector<4x32xf32>
    %42 = arith.mulf %40, %41 : vector<4x32xf32>
    %43 = vector.broadcast %1 : vector<1x32xf32> to vector<4x32xf32>
    %44 = arith.addf %42, %43 : vector<4x32xf32>
    %c0_17 = arith.constant 0 : index
    %c32_18 = arith.constant 32 : index
    %45 = vector.load %arg4[%c0_17, %c32_18] : memref<4x128xf32, #tpu.memory_space<vmem>>, vector<4x32xf32>
    tpu.vector_store %arg4[%c0_17, %c32_18], %44 {strides = array<i32>} : memref<4x128xf32, #tpu.memory_space<vmem>>, vector<4x32xf32>,
    %c0_19 = arith.constant 0 : index
    %c64 = arith.constant 64 : index
    %46 = vector.load %arg1[%c0_19, %c64] : memref<4x128xf32, #tpu.memory_space<vmem>>, vector<4x32xf32>
    %cst_20 = arith.constant dense<0.000000e+00> : vector<4xf32>
    %47 = vector.multi_reduction <add>, %46, %cst_20 [1] : vector<4x32xf32> to vector<4xf32>
    %48 = vector.shape_cast %47 : vector<4xf32> to vector<4x1xf32>
    %cst_21 = arith.constant 3.200000e+01 : f32
    %49 = vector.broadcast %cst_21 : f32 to vector<4x1xf32>
    %50 = arith.divf %48, %49 : vector<4x1xf32>
    %51 = vector.broadcast %50 : vector<4x1xf32> to vector<4x32xf32>
    %52 = arith.subf %46, %51 : vector<4x32xf32>
    %53 = arith.mulf %52, %52 : vector<4x32xf32>
    %cst_22 = arith.constant dense<0.000000e+00> : vector<4xf32>
    %54 = vector.multi_reduction <add>, %53, %cst_22 [1] : vector<4x32xf32> to vector<4xf32>
    %55 = vector.shape_cast %54 : vector<4xf32> to vector<4x1xf32>
    %cst_23 = arith.constant 3.200000e+01 : f32
    %56 = vector.broadcast %cst_23 : f32 to vector<4x1xf32>
    %57 = arith.divf %55, %56 : vector<4x1xf32>
    %cst_24 = arith.constant 9.99999974E-6 : f32
    %58 = vector.broadcast %cst_24 : f32 to vector<4x1xf32>
    %59 = arith.addf %57, %58 : vector<4x1xf32>
    %60 = math.rsqrt %59 : vector<4x1xf32>
    %61 = vector.broadcast %60 : vector<4x1xf32> to vector<4x32xf32>
    %62 = arith.mulf %52, %61 : vector<4x32xf32>
    %63 = vector.broadcast %0 : vector<1x32xf32> to vector<4x32xf32>
    %64 = arith.mulf %62, %63 : vector<4x32xf32>
    %65 = vector.broadcast %1 : vector<1x32xf32> to vector<4x32xf32>
    %66 = arith.addf %64, %65 : vector<4x32xf32>
    %c0_25 = arith.constant 0 : index
    %c64_26 = arith.constant 64 : index
    %67 = vector.load %arg4[%c0_25, %c64_26] : memref<4x128xf32, #tpu.memory_space<vmem>>, vector<4x32xf32>
    tpu.vector_store %arg4[%c0_25, %c64_26], %66 {strides = array<i32>} : memref<4x128xf32, #tpu.memory_space<vmem>>, vector<4x32xf32>,
    %c0_27 = arith.constant 0 : index
    %c96 = arith.constant 96 : index
    %68 = vector.load %arg1[%c0_27, %c96] : memref<4x128xf32, #tpu.memory_space<vmem>>, vector<4x32xf32>
    %cst_28 = arith.constant dense<0.000000e+00> : vector<4xf32>
    %69 = vector.multi_reduction <add>, %68, %cst_28 [1] : vector<4x32xf32> to vector<4xf32>
    %70 = vector.shape_cast %69 : vector<4xf32> to vector<4x1xf32>
    %cst_29 = arith.constant 3.200000e+01 : f32
    %71 = vector.broadcast %cst_29 : f32 to vector<4x1xf32>
    %72 = arith.divf %70, %71 : vector<4x1xf32>
    %73 = vector.broadcast %72 : vector<4x1xf32> to vector<4x32xf32>
    %74 = arith.subf %68, %73 : vector<4x32xf32>
    %75 = arith.mulf %74, %74 : vector<4x32xf32>
    %cst_30 = arith.constant dense<0.000000e+00> : vector<4xf32>
    %76 = vector.multi_reduction <add>, %75, %cst_30 [1] : vector<4x32xf32> to vector<4xf32>
    %77 = vector.shape_cast %76 : vector<4xf32> to vector<4x1xf32>
    %cst_31 = arith.constant 3.200000e+01 : f32
    %78 = vector.broadcast %cst_31 : f32 to vector<4x1xf32>
    %79 = arith.divf %77, %78 : vector<4x1xf32>
    %cst_32 = arith.constant 9.99999974E-6 : f32
    %80 = vector.broadcast %cst_32 : f32 to vector<4x1xf32>
    %81 = arith.addf %79, %80 : vector<4x1xf32>
    %82 = math.rsqrt %81 : vector<4x1xf32>
    %83 = vector.broadcast %82 : vector<4x1xf32> to vector<4x32xf32>
    %84 = arith.mulf %74, %83 : vector<4x32xf32>
    %85 = vector.broadcast %0 : vector<1x32xf32> to vector<4x32xf32>
    %86 = arith.mulf %84, %85 : vector<4x32xf32>
    %87 = vector.broadcast %1 : vector<1x32xf32> to vector<4x32xf32>
    %88 = arith.addf %86, %87 : vector<4x32xf32>
    %c0_33 = arith.constant 0 : index
    %c96_34 = arith.constant 96 : index
    %89 = vector.load %arg4[%c0_33, %c96_34] : memref<4x128xf32, #tpu.memory_space<vmem>>, vector<4x32xf32>
    tpu.vector_store %arg4[%c0_33, %c96_34], %88 {strides = array<i32>} : memref<4x128xf32, #tpu.memory_space<vmem>>, vector<4x32xf32>,
    return
  }
  func.func @transform_0(%arg0: i32) -> (i32, i32) {
    %c0_i32 = arith.constant 0 : i32
    %c0_i32_0 = arith.constant 0 : i32
    return %arg0, %c0_i32 : i32, i32
  }
  func.func @transform_1(%arg0: i32) -> (i32, i32) {
    %c0_i32 = arith.constant 0 : i32
    %c0_i32_0 = arith.constant 0 : i32
    %c0_i32_1 = arith.constant 0 : i32
    return %c0_i32, %c0_i32_0 : i32, i32
  }
  func.func @transform_2(%arg0: i32) -> (i32, i32) {
    %c0_i32 = arith.constant 0 : i32
    %c0_i32_0 = arith.constant 0 : i32
    %c0_i32_1 = arith.constant 0 : i32
    return %c0_i32, %c0_i32_0 : i32, i32
  }
  func.func @transform_3(%arg0: i32) -> (i32, i32) {
    %c0_i32 = arith.constant 0 : i32
    %c0_i32_0 = arith.constant 0 : i32
    return %arg0, %c0_i32 : i32, i32
  }
}

</mosaic_0001>

<llo_original>
// kernel: tpu_custom_call.1
$region0: #{tpu_custom_call.1}
  #allocation0 [shape = 'u32[]', space=smem, size = 0x4, offset = 0x4, fixed_abs, tag = 'smem constant byte address 0x4 - core index']
  #allocation1 [shape = 'u32[72,128]{1,0:T(1,128)}', space=vmem, size = 0x9000, scoped, tag = 'internal scratch']
  %s0 = inlined_call_operand.hbm [shape: f32[4,128], index: 0, kind: input, shape index: {}]
  %s1 = inlined_call_operand.hbm [shape: f32[1,32], index: 1, kind: input, shape index: {}]
  %s2 = inlined_call_operand.vmem [shape: f32[1,32], index: 2, kind: input, shape index: {}]
  %s3 = inlined_call_operand.hbm [shape: f32[4,128], index: 3, kind: output, shape index: {}]
  %s4 = sld [smem:[#allocation0]]
  $region30: #{tpu_custom_call.1} parent=0
    _
  %s6 = ssub.s32 1, %s4
  %s7 = scalar_select 0, %s6, %s4
  $region1: #{tpu_custom_call.1} parent=0
    #allocation2 [shape = 'u8[2048]{0}', space=vmem, size = 0x800, scoped, tag = 'input window, operand 0, single buffered']
    #allocation3 [shape = 's32[1]{0}', space=sflag, size = 0x4, scoped, tag = 'scoped memory for tpu_custom_call.1']
    #allocation4 [shape = 's32[1]{0}', space=sflag, size = 0x4, scoped, tag = 'scoped memory for tpu_custom_call.1']
    #allocation5 [shape = 'u8[512]{0}', space=vmem, size = 0x400, scoped, tag = 'input window, operand 1, single buffered']
    #allocation6 [shape = 's32[1]{0}', space=sflag, size = 0x4, scoped, tag = 'scoped memory for tpu_custom_call.1']
    #allocation7 [shape = 'u8[2048]{0}', space=vmem, size = 0x800, scoped, tag = 'output window, operand 0, single buffered']
    %8 = vsyncpa [#allocation3], 0
    %9 = vsyncpa [#allocation6], 0
    %10 = vsyncpa [#allocation4], 0
    // Predicated region
    $region2: #{tpu_custom_call.1} parent=1 // pred_check
      _
    $region3: #{tpu_custom_call.1} parent=1 // pred_check_branch
      %12 = sbr.rel (0) target = $region5
    $region4: #{tpu_custom_call.1} parent=1 // pred_region
      %14 = vsyncadd [#allocation3], 0
      %s16 = sshll.u32 %s0, 4
      %s17 = int_to_ptr.hbm [resolvable:$true] %s16
      %s18 = sshll.u32 [#allocation2], 4
      %s19 = int_to_ptr.vmem [resolvable:$true] %s18
      %21 = dma.hbm_to_vmem [thread:$0]  %s17, 64, %s19, [#allocation3]
    $region5: #{tpu_custom_call.1} parent=1 // pred_fallthru
      _
    // Predicated region
    $region6: #{tpu_custom_call.1} parent=1 // pred_check
      _
    $region7: #{tpu_custom_call.1} parent=1 // pred_check_branch
      %23 = sbr.rel (0) target = $region9
    $region8: #{tpu_custom_call.1} parent=1 // pred_region
      %25 = vsyncadd [#allocation6], 0
      %s27 = sshll.u32 %s1, 4
      %s28 = int_to_ptr.hbm [resolvable:$true] %s27
      %s29 = sshll.u32 [#allocation5], 4
      %s30 = int_to_ptr.vmem [resolvable:$true] %s29
      %32 = dma.hbm_to_vmem [thread:$0]  %s28, 16, %s30, [#allocation6]
    $region9: #{tpu_custom_call.1} parent=1 // pred_fallthru
      _
    // Predicated region
    $region10: #{tpu_custom_call.1} parent=1 // pred_check
      _
    $region11: #{tpu_custom_call.1} parent=1 // pred_check_branch
      %34 = sbr.rel (0) target = $region13
    $region12: #{tpu_custom_call.1} parent=1 // pred_region
      _
    $region13: #{tpu_custom_call.1} parent=1 // pred_fallthru
      _
    // Predicated region
    $region14: #{tpu_custom_call.1} parent=1 // pred_check
      _
    $region15: #{tpu_custom_call.1} parent=1 // pred_check_branch
      %36 = sbr.rel (0) target = $region17
    $region16: #{tpu_custom_call.1} parent=1 // pred_region
      %38 = dma.done [#allocation3], 64
    $region17: #{tpu_custom_call.1} parent=1 // pred_fallthru
      _
    // Predicated region
    $region18: #{tpu_custom_call.1} parent=1 // pred_check
      _
    $region19: #{tpu_custom_call.1} parent=1 // pred_check_branch
      %40 = sbr.rel (0) target = $region21
    $region20: #{tpu_custom_call.1} parent=1 // pred_region
      %42 = dma.done [#allocation6], 16
    $region21: #{tpu_custom_call.1} parent=1 // pred_fallthru
      _
    %v43 = vld [vmem:[#allocation5] sm:$0x1]
    %v44 = vld [vmem:[%s2] sm:$0x1]
    %v45 = vld [vmem:[#allocation2] sm:$0xf]
    %vm46 = vcmask 257024
    %v47 = vsel %vm46, %v45, 0.0
    %48 = vadd.xlane.f32.xlu0 %v47
    %v49 = vpop.xlane.xlu0 %48
    %v50 = vrcp.pop 32.0
    %v51 = vmul.f32 32.0, %v50
    %v52 = vsub.f32 1.0, %v51
    %v53 = vmul.f32 %v50, %v52
    %v54 = vadd.f32 %v50, %v53
    %vm55 = vweird.f32 %v50
    %v56 = vsel %vm55, %v50, %v54
    %v57 = vmul.f32 %v49, %v56
    %v58 = vsub.f32 %v45, %v57
    %v59 = vmul.f32 %v58, %v58
    %v60 = vsel %vm46, %v59, 0.0
    %61 = vadd.xlane.f32.xlu0 %v60
    %v62 = vpop.xlane.xlu0 %61
    %v63 = vmul.f32 %v62, %v56
    %v64 = vadd.f32 %v63, 1e-05
    %v65 = vrsqrt.pop %v64
    %v66 = vmul.f32 %v65, %v64
    %v67 = vmul.f32 %v66, %v65
    %v68 = vmul.f32 0.5, %v67
    %v69 = vsub.f32 1.5, %v68
    %v70 = vmul.f32 %v65, %v69
    %vm71 = vweird.f32 %v64
    %vm72 = vweird.f32 %v65
    %vm73 = vmor %vm71, %vm72
    %v74 = vsel %vm73, %v65, %v70
    %v75 = vmul.f32 %v58, %v74
    %v77 = vperm.slane %v43, 0
    %v79 = vmul.f32 %v75, %v77
    %v81 = vperm.slane %v44, 0
    %v83 = vadd.f32 %v79, %v81
    %84 = vst.msk [vmem:[#allocation7] sm:$0xf] %vm46, %v83
    %v85 = vld [vmem:[#allocation2] sm:$0xf]
    %87 = vrot.lane.b32.xlu0 %v85, 96
    %v88 = vpop.permute.xlu0 %87
    %v90 = vsel %vm46, %v88, 0.0
    %91 = vadd.xlane.f32.xlu0 %v90
    %v92 = vpop.xlane.xlu0 %91
    %v93 = vmul.f32 %v92, %v56
    %v94 = vsub.f32 %v85, %v93
    %v95 = vmul.f32 %v94, %v94
    %97 = vrot.lane.b32.xlu0 %v95, 96
    %v98 = vpop.permute.xlu0 %97
    %v100 = vsel %vm46, %v98, 0.0
    %101 = vadd.xlane.f32.xlu0 %v100
    %v102 = vpop.xlane.xlu0 %101
    %v103 = vmul.f32 %v102, %v56
    %v104 = vadd.f32 %v103, 1e-05
    %v105 = vrsqrt.pop %v104
    %v106 = vmul.f32 %v105, %v104
    %v107 = vmul.f32 %v106, %v105
    %v108 = vmul.f32 0.5, %v107
    %v109 = vsub.f32 1.5, %v108
    %v110 = vmul.f32 %v105, %v109
    %vm111 = vweird.f32 %v104
    %vm112 = vweird.f32 %v105
    %vm113 = vmor %vm111, %vm112
    %v114 = vsel %vm113, %v105, %v110
    %v115 = vmul.f32 %v94, %v114
    %116 = vrot.lane.b32.xlu0 %v77, 32
    %v117 = vpop.permute.xlu0 %116
    %v119 = vmul.f32 %v115, %v117
    %120 = vrot.lane.b32.xlu0 %v81, 32
    %v121 = vpop.permute.xlu0 %120
    %v123 = vadd.f32 %v119, %v121
    %vm124 = vcmask 519424
    %125 = vst.msk [vmem:[#allocation7] sm:$0xf] %vm124, %v123
    %v126 = vld [vmem:[#allocation2] sm:$0xf]
    %128 = vrot.lane.b32.xlu0 %v126, 64
    %v129 = vpop.permute.xlu0 %128
    %v131 = vsel %vm46, %v129, 0.0
    %132 = vadd.xlane.f32.xlu0 %v131
    %v133 = vpop.xlane.xlu0 %132
    %v134 = vmul.f32 %v133, %v56
    %v135 = vsub.f32 %v126, %v134
    %v136 = vmul.f32 %v135, %v135
    %138 = vrot.lane.b32.xlu0 %v136, 64
    %v139 = vpop.permute.xlu0 %138
    %v141 = vsel %vm46, %v139, 0.0
    %142 = vadd.xlane.f32.xlu0 %v141
    %v143 = vpop.xlane.xlu0 %142
    %v144 = vmul.f32 %v143, %v56
    %v145 = vadd.f32 %v144, 1e-05
    %v146 = vrsqrt.pop %v145
    %v147 = vmul.f32 %v146, %v145
    %v148 = vmul.f32 %v147, %v146
    %v149 = vmul.f32 0.5, %v148
    %v150 = vsub.f32 1.5, %v149
    %v151 = vmul.f32 %v146, %v150
    %vm152 = vweird.f32 %v145
    %vm153 = vweird.f32 %v146
    %vm154 = vmor %vm152, %vm153
    %v155 = vsel %vm154, %v146, %v151
    %v156 = vmul.f32 %v135, %v155
    %157 = vrot.lane.b32.xlu0 %v77, 64
    %v158 = vpop.permute.xlu0 %157
    %v160 = vmul.f32 %v156, %v158
    %161 = vrot.lane.b32.xlu0 %v81, 64
    %v162 = vpop.permute.xlu0 %161
    %v164 = vadd.f32 %v160, %v162
    %vm165 = vcmask 781824
    %166 = vst.msk [vmem:[#allocation7] sm:$0xf] %vm165, %v164
    %v167 = vld [vmem:[#allocation2] sm:$0xf]
    %169 = vrot.lane.b32.xlu0 %v167, 32
    %v170 = vpop.permute.xlu0 %169
    %v172 = vsel %vm46, %v170, 0.0
    %173 = vadd.xlane.f32.xlu0 %v172
    %v174 = vpop.xlane.xlu0 %173
    %v175 = vmul.f32 %v174, %v56
    %v176 = vsub.f32 %v167, %v175
    %v177 = vmul.f32 %v176, %v176
    %179 = vrot.lane.b32.xlu0 %v177, 32
    %v180 = vpop.permute.xlu0 %179
    %v182 = vsel %vm46, %v180, 0.0
    %183 = vadd.xlane.f32.xlu0 %v182
    %v184 = vpop.xlane.xlu0 %183
    %v185 = vmul.f32 %v184, %v56
    %v186 = vadd.f32 %v185, 1e-05
    %v187 = vrsqrt.pop %v186
    %v188 = vmul.f32 %v187, %v186
    %v189 = vmul.f32 %v188, %v187
    %v190 = vmul.f32 0.5, %v189
    %v191 = vsub.f32 1.5, %v190
    %v192 = vmul.f32 %v187, %v191
    %vm193 = vweird.f32 %v186
    %vm194 = vweird.f32 %v187
    %vm195 = vmor %vm193, %vm194
    %v196 = vsel %vm195, %v187, %v192
    %v197 = vmul.f32 %v176, %v196
    %198 = vrot.lane.b32.xlu0 %v77, 96
    %v199 = vpop.permute.xlu0 %198
    %v201 = vmul.f32 %v197, %v199
    %202 = vrot.lane.b32.xlu0 %v81, 96
    %v203 = vpop.permute.xlu0 %202
    %v205 = vadd.f32 %v201, %v203
    %vm206 = vcmask 1044224
    %207 = vst.msk [vmem:[#allocation7] sm:$0xf] %vm206, %v205
    // Predicated region
    $region22: #{tpu_custom_call.1} parent=1 // pred_check
      _
    $region23: #{tpu_custom_call.1} parent=1 // pred_check_branch
      %209 = sbr.rel (0) target = $region25
    $region24: #{tpu_custom_call.1} parent=1 // pred_region
      %211 = vsyncadd [#allocation4], 0
      %s213 = sshll.u32 [#allocation7], 4
      %s214 = int_to_ptr.vmem [resolvable:$true] %s213
      %s215 = sshll.u32 %s3, 4
      %s216 = int_to_ptr.hbm [resolvable:$true] %s215
      %218 = dma.vmem_to_hbm [thread:$0]  %s214, 64, %s216, [#allocation4]
    $region25: #{tpu_custom_call.1} parent=1 // pred_fallthru
      _
    // Predicated region
    $region26: #{tpu_custom_call.1} parent=1 // pred_check
      _
    $region27: #{tpu_custom_call.1} parent=1 // pred_check_branch
      %220 = sbr.rel (0) target = $region29
    $region28: #{tpu_custom_call.1} parent=1 // pred_region
      %222 = dma.done [#allocation4], 64
    $region29: #{tpu_custom_call.1} parent=1 // pred_fallthru
      _
    %223 = vsyncpa [#allocation3], 1
    %224 = vsyncpa [#allocation6], 1
    %225 = vsyncpa [#allocation4], 1

</llo_original>
